<compile_context>
chip_gen: v6e
topology: v6e:2x2x1
jax: 0.10.0
libtpu: 0.0.40
codegen_flags: <defaults>
</compile_context>

<pallas_src>
import numpy as np
import jax
import jax.numpy as jnp
from jax import lax
from jax.experimental import pallas as pl
from jax.experimental.pallas import tpu as pltpu

# --- module hyper-params (small, deterministic) -----------------------------
ACIDS = "0ACDEFGHIKLMNPQRSTVWYX"        # synthetic vocabulary; index 0 = padding
VOCAB = len(ACIDS)                      # 22
EMB = 32                                # emb_size
PEP_PAD = 3                             # peptide_pad
PEP_CORE = 21                           # positional-encoding length for peptide
PEP_LEN = PEP_CORE + 2 * PEP_PAD        # 27
MHC_LEN = 34
PADDING_IDX = 0
L_TOT = PEP_LEN + MHC_LEN               # 61 tokens per example after fusion
K_TOT = 2 * VOCAB + L_TOT               # 105 distinct rows in the fused table

# --- packing constants -------------------------------------------------------
PACK = 4                                # tokens per output row  -> N = 128 lanes
PITCH = 128                             # per-slot row pitch in the packed K dim
K_PAD = PACK * PITCH                    # 512
N_PACK = PACK * EMB                     # 128
DROP_COL = PITCH - 1                    # 127: all-zero table row (masked pos-enc)


def positional_encoding_np(length, emb_size):
    position = np.arange(length, dtype=np.float32)[:, None]
    div_term = np.exp(
        np.arange(0, emb_size, 2, dtype=np.float32) * -(np.log(10000.0) / emb_size)
    )
    pe = np.zeros((length, emb_size), dtype=np.float32)
    pe[:, 0::2] = np.sin(position * div_term)
    pe[:, 1::2] = np.cos(position * div_term)
    return pe


POS_PEP = positional_encoding_np(PEP_CORE, EMB)   # (21, 32)
POS_MHC = positional_encoding_np(MHC_LEN, EMB)    # (34, 32)
# Fused positional slab over the concatenated [peptide | mhc] sequence.
# Peptide flank rows stay zero (reference only adds positional to the core).
POS_ALL = np.zeros((L_TOT, EMB), dtype=np.float32)
POS_ALL[PEP_PAD:PEP_PAD + PEP_CORE] = POS_PEP
POS_ALL[PEP_LEN:] = POS_MHC

# Constant 0/1 expansion matrix: row j broadcasts cand column j
#   (j < PACK : embedding candidate of slot j, local columns  0..43
#    j >= PACK: positional candidate of slot j-PACK, local columns 44..127)
_cols = np.arange(K_PAD)
_slot = _cols // PITCH
_local = _cols % PITCH
EXPAND_NP = np.zeros((2 * PACK, K_PAD), np.float32)
for _j in range(2 * PACK):
    EXPAND_NP[_j] = ((_slot == (_j % PACK)) &
                     ((_local < 2 * VOCAB) == (_j < PACK))).astype(np.float32)


# --- Pallas kernel -----------------------------------------------------------
def network_kernel(cand_ref, expand_ref, table_ref, out_ref):
    # cand_ref  : (R, 8)   f32  per packed row: [emb_col x4, pos_col x4], all < 128
    # expand_ref: (8, 512) bf16 constant 0/1 slot/kind expansion matrix
    # table_ref : (512, 128) f32 block-diagonal fused lookup table
    # out_ref   : (R, 128) f32  (PACK=4 tokens x EMB=32 per row; lane-dense)
    #
    # Tiny exact bf16 MXU matmul broadcasts each row's 8 candidate values
    # across their 128-wide column band -> per-column target row index.
    target = jnp.dot(cand_ref[...].astype(jnp.bfloat16), expand_ref[...],
                     preferred_element_type=jnp.float32)          # (R, 512)
    local = lax.broadcasted_iota(jnp.int32, (1, K_PAD), 1) & (PITCH - 1)
    # Two-hot selector (one embedding row + one positional row per token),
    # built with a single compare + cast (no OR, no reshapes, no relayouts).
    sel = (target == local.astype(jnp.float32)).astype(jnp.float32)
    # Main MXU GEMM: embedding lookup + masked positional add, 128-lane result.
    out_ref[...] = jnp.dot(sel, table_ref[...],
                           preferred_element_type=jnp.float32)


def _choose_tile(b):
    """Pick (padded_batch, batch_tile).

    * batch is padded so B_pad % tile == 0 (and B_pad*L_TOT % PACK == 0)
    * when the grid has >1 step the tile is a multiple of 32 so every block's
      second-minor dim (tile*61/4) stays a multiple of 8
    * tile capped at 256 (VMEM-safe on v7x) and chosen so moderate batches get
      >= 2 grid steps (both v7x TensorCores get work via "parallel")
    """
    if b <= 32:
        bp = ((b + PACK - 1) // PACK) * PACK
        return bp, bp
    tile = min(256, 32 * max(1, (b // 2) // 32))
    bp = ((b + tile - 1) // tile) * tile
    return bp, tile


def network_forward(peptide_x, mhc_x, pep_table, mhc_table):
    B = peptide_x.shape[0]
    peptide_x = peptide_x.astype(jnp.int32)
    mhc_x = mhc_x.astype(jnp.int32)

    # Mask is trivial VPU work; keep it in the wrapper (same as the reference).
    masks = peptide_x[:, PEP_PAD:PEP_LEN - PEP_PAD] != PADDING_IDX       # (B, 21)

    # ---- per-token candidate columns (tiny XLA ops; nothing in-kernel) -----
    B_pad, tile = _choose_tile(B)
    ids_all = jnp.concatenate([peptide_x, mhc_x + VOCAB], axis=1)        # (B, 61)
    if B_pad != B:
        ids_all = jnp.pad(ids_all, ((0, B_pad - B), (0, 0)))             # pad = PADDING_IDX
    pos_idx = jnp.arange(L_TOT, dtype=jnp.int32)[None, :]                # (1, 61)
    in_core = (pos_idx >= PEP_PAD) & (pos_idx < PEP_PAD + PEP_CORE)
    drop = in_core & (ids_all == PADDING_IDX)                            # masked positional
    pos_all = jnp.where(drop, DROP_COL,
                        jnp.broadcast_to(2 * VOCAB + pos_idx, ids_all.shape))

    rows = B_pad * L_TOT // PACK
    cand = jnp.concatenate(
        [ids_all.reshape(rows, PACK), pos_all.reshape(rows, PACK)],
        axis=1).astype(jnp.float32)                                      # (rows, 8)

    # ---- block-diagonal fused lookup table (4 replicas, 32-lane offsets) ---
    fused = jnp.concatenate([pep_table.astype(jnp.float32),
                             mhc_table.astype(jnp.float32),
                             jnp.asarray(POS_ALL)], axis=0)              # (105, 32)
    fused = jnp.pad(fused, ((0, PITCH - K_TOT), (0, 0)))                 # (128, 32)
    table_packed = jnp.kron(jnp.eye(PACK, dtype=jnp.float32), fused)     # (512, 128)

    expand = jnp.asarray(EXPAND_NP, dtype=jnp.bfloat16)                  # exact 0/1

    row_tile = tile * L_TOT // PACK
    nb = rows // row_tile

    out_packed = pl.pallas_call(
        network_kernel,
        out_shape=jax.ShapeDtypeStruct((rows, N_PACK), jnp.float32),
        grid=(nb,),
        in_specs=[
            pl.BlockSpec((row_tile, 2 * PACK), lambda i: (i, 0)),
            pl.BlockSpec((2 * PACK, K_PAD), lambda i: (0, 0)),
            pl.BlockSpec((K_PAD, N_PACK), lambda i: (0, 0)),
        ],
        out_specs=pl.BlockSpec((row_tile, N_PACK), lambda i: (i, 0)),
        compiler_params=pltpu.CompilerParams(
            dimension_semantics=("parallel",),
            vmem_limit_bytes=64 * 1024 * 1024,
        ),
    )(cand, expand, table_packed)

    # (rows, 128) -> (B_pad, 61, 32) is a pure row-major reshape (no copy).
    out = out_packed.reshape(B_pad, L_TOT, EMB)[:B]
    pep_emb = out[:, :PEP_LEN, :]
    mhc_emb = out[:, PEP_LEN:, :]
    return pep_emb, mhc_emb, masks


# --- pure-JAX reference for sanity check -------------------------------------
def reference_forward(peptide_x, mhc_x, pep_table, mhc_table):
    mask = peptide_x[:, PEP_PAD:PEP_LEN - PEP_PAD] != PADDING_IDX
    pep_emb = pep_table[peptide_x]
    mhc_emb = mhc_table[mhc_x]
    pos_masked = jnp.asarray(POS_PEP)[None] * mask[:, :, None].astype(jnp.float32)
    pep_emb = pep_emb.at[:, PEP_PAD:PEP_PAD + PEP_CORE, :].add(pos_masked)
    mhc_emb = mhc_emb + jnp.asarray(POS_MHC)[None]
    return pep_emb, mhc_emb, mask


if __name__ == "__main__":
    key = jax.random.PRNGKey(0)
    k_pep_tab, k_mhc_tab, k_ids = jax.random.split(key, 3)

    # Deterministic parameter init (matches reset_parameters: U(-0.1, 0.1)).
    pep_table = jax.random.uniform(k_pep_tab, (VOCAB, EMB), jnp.float32, -0.1, 0.1)
    mhc_table = jax.random.uniform(k_mhc_tab, (VOCAB, EMB), jnp.float32, -0.1, 0.1)

    def make_inputs(kp, km, b):
        core = jax.random.randint(kp, (b, PEP_CORE), 1, VOCAB, jnp.int32)
        core = core.at[:, 15:].set(0)   # simulate shorter peptides -> masked positions
        pep = jnp.concatenate([jnp.zeros((b, PEP_PAD), jnp.int32), core,
                               jnp.zeros((b, PEP_PAD), jnp.int32)], axis=1)
        mhc = jax.random.randint(km, (b, MHC_LEN), 1, VOCAB, jnp.int32)
        return pep, mhc

    # B=2: tiny demo (single block).  B=33: non-divisible batch -> exercises
    # padding + the multi-step "parallel" grid path.
    for b in (2, 33):
        kp, km = jax.random.split(jax.random.fold_in(k_ids, b))
        peptide_x, mhc_x = make_inputs(kp, km, b)

        pep_emb, mhc_emb, masks = network_forward(peptide_x, mhc_x, pep_table, mhc_table)
        jax.block_until_ready((pep_emb, mhc_emb, masks))

        ref_pep, ref_mhc, ref_mask = reference_forward(peptide_x, mhc_x, pep_table, mhc_table)
        np.testing.assert_allclose(np.asarray(pep_emb), np.asarray(ref_pep), atol=1e-5)
        np.testing.assert_allclose(np.asarray(mhc_emb), np.asarray(ref_mhc), atol=1e-5)
        np.testing.assert_array_equal(np.asarray(masks), np.asarray(ref_mask))

    print("KERNEL_OK")
</pallas_src>

<mosaic_0001>
module attributes {stable_mosaic.version = 11 : i64} {
  func.func @network_kernel(%arg0: i32, %arg1: memref<61x8xf32, #tpu.memory_space<vmem>>, %arg2: memref<8x512xbf16, #tpu.memory_space<vmem>>, %arg3: memref<512x128xf32, #tpu.memory_space<vmem>>, %arg4: memref<61x128xf32, #tpu.memory_space<vmem>>) attributes {dimension_semantics = [#tpu.dimension_semantics<parallel>], iteration_bounds = array<i64: 1>, scalar_prefetch = 0 : i64, scratch_operands = 0 : i64, tpu.core_type = #tpu.core_type<tc>, window_params = [{transform_indices = @transform_0, window_bounds = array<i64: 61, 8>}, {pipeline_mode = #tpu.pipeline_mode<synchronous>, transform_indices = @transform_1, window_bounds = array<i64: 8, 512>}, {pipeline_mode = #tpu.pipeline_mode<synchronous>, transform_indices = @transform_2, window_bounds = array<i64: 512, 128>}, {transform_indices = @transform_3, window_bounds = array<i64: 61, 128>}]} {
    %c0 = arith.constant 0 : index
    %c0_0 = arith.constant 0 : index
    %0 = vector.load %arg1[%c0, %c0_0] : memref<61x8xf32, #tpu.memory_space<vmem>>, vector<61x8xf32>
    %1 = arith.truncf %0 : vector<61x8xf32> to vector<61x8xbf16>
    %c0_1 = arith.constant 0 : index
    %c0_2 = arith.constant 0 : index
    %2 = vector.load %arg2[%c0_1, %c0_2] : memref<8x512xbf16, #tpu.memory_space<vmem>>, vector<8x512xbf16>
    %cst = arith.constant dense<0.000000e+00> : vector<61x512xf32>
    %3 = tpu.matmul %1, %2, %cst {dimension_numbers = #tpu.dot_dimension_numbers<[1], [0], [0], [1], [0, 0, 1, 1], [], []>} : vector<61x8xbf16>, vector<8x512xbf16>, vector<61x512xf32> -> vector<61x512xf32>
    %4 = tpu.iota {dimensions = array<i32: 1>} : vector<1x512xi32>
    %c127_i32 = arith.constant 127 : i32
    %5 = vector.broadcast %c127_i32 : i32 to vector<1x512xi32>
    %6 = arith.andi %4, %5 : vector<1x512xi32>
    %7 = arith.sitofp %6 : vector<1x512xi32> to vector<1x512xf32>
    %8 = vector.broadcast %7 : vector<1x512xf32> to vector<61x512xf32>
    %9 = arith.cmpf oeq, %3, %8 : vector<61x512xf32>
    %10 = arith.extui %9 : vector<61x512xi1> to vector<61x512xi32>
    %11 = arith.sitofp %10 : vector<61x512xi32> to vector<61x512xf32>
    %c0_3 = arith.constant 0 : index
    %c0_4 = arith.constant 0 : index
    %12 = vector.load %arg3[%c0_3, %c0_4] : memref<512x128xf32, #tpu.memory_space<vmem>>, vector<512x128xf32>
    %cst_5 = arith.constant dense<0.000000e+00> : vector<61x128xf32>
    %13 = tpu.matmul %11, %12, %cst_5 {dimension_numbers = #tpu.dot_dimension_numbers<[1], [0], [0], [1], [0, 0, 1, 1], [], []>} : vector<61x512xf32>, vector<512x128xf32>, vector<61x128xf32> -> vector<61x128xf32>
    %c0_6 = arith.constant 0 : index
    %c0_7 = arith.constant 0 : index
    %14 = vector.load %arg4[%c0_6, %c0_7] : memref<61x128xf32, #tpu.memory_space<vmem>>, vector<61x128xf32>
    tpu.vector_store %arg4[%c0_6, %c0_7], %13 {strides = array<i32>} : memref<61x128xf32, #tpu.memory_space<vmem>>, vector<61x128xf32>,
    return
  }
  func.func @transform_0(%arg0: i32) -> (i32, i32) {
    %c0_i32 = arith.constant 0 : i32
    %c0_i32_0 = arith.constant 0 : i32
    return %arg0, %c0_i32 : i32, i32
  }
  func.func @transform_1(%arg0: i32) -> (i32, i32) {
    %c0_i32 = arith.constant 0 : i32
    %c0_i32_0 = arith.constant 0 : i32
    %c0_i32_1 = arith.constant 0 : i32
    return %c0_i32, %c0_i32_0 : i32, i32
  }
  func.func @transform_2(%arg0: i32) -> (i32, i32) {
    %c0_i32 = arith.constant 0 : i32
    %c0_i32_0 = arith.constant 0 : i32
    %c0_i32_1 = arith.constant 0 : i32
    return %c0_i32, %c0_i32_0 : i32, i32
  }
  func.func @transform_3(%arg0: i32) -> (i32, i32) {
    %c0_i32 = arith.constant 0 : i32
    %c0_i32_0 = arith.constant 0 : i32
    return %arg0, %c0_i32 : i32, i32
  }
}

</mosaic_0001>

<llo_original>
// kernel: tpu_custom_call.1
$region0: #{tpu_custom_call.1}
  #allocation0 [shape = 'u32[]', space=smem, size = 0x4, offset = 0x4, fixed_abs, tag = 'smem constant byte address 0x4 - core index']
  #allocation1 [shape = 'u32[144,128]{1,0:T(1,128)}', space=vmem, size = 0x12000, scoped, tag = 'internal scratch']
  %s0 = inlined_call_operand.vmem [shape: f32[61,8], index: 0, kind: input, shape index: {}]
  %s1 = inlined_call_operand.vmem [shape: bf16[8,512], index: 1, kind: input, shape index: {}]
  %s2 = inlined_call_operand.hbm [shape: f32[512,128], index: 2, kind: input, shape index: {}]
  %s3 = inlined_call_operand.hbm [shape: f32[61,128], index: 3, kind: output, shape index: {}]
  %s4 = sld [smem:[#allocation0]]
  $region26: #{tpu_custom_call.1} parent=0
    _
  %s6 = ssub.s32 1, %s4
  %s7 = scalar_select 0, %s6, %s4
  $region1: #{tpu_custom_call.1} parent=0
    #allocation2 [shape = 'u8[262144]{0}', space=vmem, size = 0x40000, scoped, tag = 'input window, operand 2, single buffered']
    #allocation3 [shape = 's32[1]{0}', space=sflag, size = 0x4, scoped, tag = 'scoped memory for tpu_custom_call.1']
    #allocation4 [shape = 's32[1]{0}', space=sflag, size = 0x4, scoped, tag = 'scoped memory for tpu_custom_call.1']
    #allocation5 [shape = 'u8[32768]{0}', space=vmem, size = 0x8000, scoped, tag = 'output window, operand 0, single buffered']
    %8 = vsyncpa [#allocation3], 0
    %9 = vsyncpa [#allocation4], 0
    // Predicated region
    $region2: #{tpu_custom_call.1} parent=1 // pred_check
      _
    $region3: #{tpu_custom_call.1} parent=1 // pred_check_branch
      %11 = sbr.rel (0) target = $region5
    $region4: #{tpu_custom_call.1} parent=1 // pred_region
      _
    $region5: #{tpu_custom_call.1} parent=1 // pred_fallthru
      _
    // Predicated region
    $region6: #{tpu_custom_call.1} parent=1 // pred_check
      _
    $region7: #{tpu_custom_call.1} parent=1 // pred_check_branch
      %13 = sbr.rel (0) target = $region9
    $region8: #{tpu_custom_call.1} parent=1 // pred_region
      _
    $region9: #{tpu_custom_call.1} parent=1 // pred_fallthru
      _
    // Predicated region
    $region10: #{tpu_custom_call.1} parent=1 // pred_check
      _
    $region11: #{tpu_custom_call.1} parent=1 // pred_check_branch
      %15 = sbr.rel (0) target = $region13
    $region12: #{tpu_custom_call.1} parent=1 // pred_region
      %s17 = ssub.s32 8192, 8192
      %18 = vsyncadd [#allocation3], %s17
      %s19 = sshll.u32 [#allocation2], 4
      %s20 = int_to_ptr.vmem [resolvable:$true] %s19
      %25 = dma.hbm_to_vmem [thread:$0]  %s2, 8192, %s20, [#allocation3], 128, 128, 8
    $region13: #{tpu_custom_call.1} parent=1 // pred_fallthru
      _
    // Predicated region
    $region14: #{tpu_custom_call.1} parent=1 // pred_check
      _
    $region15: #{tpu_custom_call.1} parent=1 // pred_check_branch
      %27 = sbr.rel (0) target = $region17
    $region16: #{tpu_custom_call.1} parent=1 // pred_region
      %28 = dma.done [#allocation3], 8192
    $region17: #{tpu_custom_call.1} parent=1 // pred_fallthru
      _
    %v30 = vld [vmem:[%s0] sm:$0xff]
    %v31 = vld [vmem:[%s0 + $0x8] sm:$0xff]
    %v32 = vld [vmem:[%s0 + $0x10] sm:$0xff]
    %v33 = vld [vmem:[%s0 + $0x18] sm:$0xff]
    %v34 = vld [vmem:[%s0 + $0x20] sm:$0xff]
    %v35 = vld [vmem:[%s0 + $0x28] sm:$0xff]
    %v36 = vld [vmem:[%s0 + $0x30] sm:$0xff]
    %v37 = vld [vmem:[%s0 + $0x38] sm:$0x1f]
    %v38 = vpack.c.bf16 %v31, %v30
    %v39 = vpack.c.bf16 %v33, %v32
    %v40 = vpack.c.bf16 %v35, %v34
    %v41 = vpack.c.bf16 %v37, %v36
    %v42 = vld [vmem:[%s1] sm:$0xff]
    %v43 = vld [vmem:[%s1 + $0x8] sm:$0xff]
    %v46 = vunpack.c.l.b16 %v42
    %v47 = vunpack.c.h.b16 %v42
    %v48 = vunpack.c.l.b16 %v43
    %v49 = vunpack.c.h.b16 %v43
    %v50 = vpack.c.b16 %v46, %v46
    %v51 = vpack.c.b16 %v47, %v47
    %v52 = vpack.c.b16 %v48, %v48
    %v53 = vpack.c.b16 %v49, %v49
    %vm54 = vcmask 64512
    %v56 = vsel %vm54, %v38, 0
    %v59 = vsel %vm54, %v39, 0
    %v62 = vsel %vm54, %v40, 0
    %v65 = vsel %vm54, %v41, 0
    %vm67 = vcmask 1043456
    %v69 = vsel %vm67, %v50, 0
    %v72 = vsel %vm67, %v51, 0
    %v75 = vsel %vm67, %v52, 0
    %v78 = vsel %vm67, %v53, 0
    %80 = vmatprep.subr.bf16.mxu0 0
    %81 = vmatpush1.bf16.msra.mxu0 0
    %82 = vmatprep.subr.bf16.mxu0 0
    %83 = vmatpush1.bf16.msra.mxu0 0
    %84 = vmatprep.subr.bf16.mxu0 0
    %85 = vmatpush1.bf16.msra.mxu0 0
    %86 = vmatprep.subr.bf16.mxu0 0
    %87 = vmatpush1.bf16.msra.mxu0 0
    %88 = vmatprep.subr.bf16.mxu0 0
    %89 = vmatpush1.bf16.msra.mxu0 0
    %90 = vmatprep.subr.bf16.mxu0 0
    %91 = vmatpush1.bf16.msra.mxu0 0
    %92 = vmatprep.subr.bf16.mxu0 0
    %93 = vmatpush1.bf16.msra.mxu0 0
    %94 = vmatprep.subr.bf16.mxu0 %v72
    %95 = vmatpush1.bf16.msra.mxu0 %v69
    %96 = vmatprep.subr.bf16.mxu0 0
    %97 = vmatpush2.bf16.msra.mxu0 0
    %98 = vmatprep.subr.bf16.mxu0 0
    %99 = vmatpush2.bf16.msra.mxu0 0
    %100 = vmatprep.subr.bf16.mxu0 0
    %101 = vmatpush2.bf16.msra.mxu0 0
    %102 = vmatprep.subr.bf16.mxu0 0
    %103 = vmatpush2.bf16.msra.mxu0 0
    %104 = vmatprep.subr.bf16.mxu0 0
    %105 = vmatpush2.bf16.msra.mxu0 0
    %106 = vmatprep.subr.bf16.mxu0 0
    %107 = vmatpush2.bf16.msra.mxu0 0
    %108 = vmatprep.subr.bf16.mxu0 0
    %109 = vmatpush2.bf16.msra.mxu0 0
    %110 = vmatprep.subr.bf16.mxu0 0
    %111 = vmatpush2.bf16.msra.mxu0 0
    %112 = vmatprep.mubr.bf16.mxu0 0
    %113 = vmatmul.mubr.bf16.gmra.mxu0 %v56
    %v114 = vpop.f32.mrf.mxu0
    %v115 = vadd.f32 0.0, %v114
    %v116 = vpop.f32.mrf.mxu0
    %v117 = vadd.f32 0.0, %v116
    %v118 = vpop.f32.mrf.mxu0
    %v119 = vadd.f32 0.0, %v118
    %v120 = vpop.f32.mrf.mxu0
    %v121 = vadd.f32 0.0, %v120
    %122 = vmatprep.mubr.bf16.mxu0 0
    %123 = vmatmul.mubr.bf16.gmra.mxu0 %v59
    %v124 = vpop.f32.mrf.mxu0
    %v125 = vadd.f32 0.0, %v124
    %v126 = vpop.f32.mrf.mxu0
    %v127 = vadd.f32 0.0, %v126
    %v128 = vpop.f32.mrf.mxu0
    %v129 = vadd.f32 0.0, %v128
    %v130 = vpop.f32.mrf.mxu0
    %v131 = vadd.f32 0.0, %v130
    %132 = vmatprep.mubr.bf16.mxu0 0
    %133 = vmatmul.mubr.bf16.gmra.mxu0 %v62
    %v134 = vpop.f32.mrf.mxu0
    %v135 = vadd.f32 0.0, %v134
    %v136 = vpop.f32.mrf.mxu0
    %v137 = vadd.f32 0.0, %v136
    %v138 = vpop.f32.mrf.mxu0
    %v139 = vadd.f32 0.0, %v138
    %v140 = vpop.f32.mrf.mxu0
    %v141 = vadd.f32 0.0, %v140
    %142 = vmatprep.mubr.bf16.mxu0 0
    %143 = vmatmul.mubr.bf16.gmra.mxu0 %v65
    %v144 = vpop.f32.mrf.mxu0
    %v145 = vadd.f32 0.0, %v144
    %v146 = vpop.f32.mrf.mxu0
    %v147 = vadd.f32 0.0, %v146
    %v148 = vpop.f32.mrf.mxu0
    %v149 = vadd.f32 0.0, %v148
    %v150 = vpop.f32.mrf.mxu0
    %v151 = vadd.f32 0.0, %v150
    %152 = vdwg.mxu0
    %153 = vmatprep.subr.bf16.mxu0 0
    %154 = vmatpush1.bf16.msra.mxu0 0
    %155 = vmatprep.subr.bf16.mxu0 0
    %156 = vmatpush1.bf16.msra.mxu0 0
    %157 = vmatprep.subr.bf16.mxu0 0
    %158 = vmatpush1.bf16.msra.mxu0 0
    %159 = vmatprep.subr.bf16.mxu0 0
    %160 = vmatpush1.bf16.msra.mxu0 0
    %161 = vmatprep.subr.bf16.mxu0 0
    %162 = vmatpush1.bf16.msra.mxu0 0
    %163 = vmatprep.subr.bf16.mxu0 0
    %164 = vmatpush1.bf16.msra.mxu0 0
    %165 = vmatprep.subr.bf16.mxu0 0
    %166 = vmatpush1.bf16.msra.mxu0 0
    %167 = vmatprep.subr.bf16.mxu0 %v78
    %168 = vmatpush1.bf16.msra.mxu0 %v75
    %169 = vmatprep.subr.bf16.mxu0 0
    %170 = vmatpush2.bf16.msra.mxu0 0
    %171 = vmatprep.subr.bf16.mxu0 0
    %172 = vmatpush2.bf16.msra.mxu0 0
    %173 = vmatprep.subr.bf16.mxu0 0
    %174 = vmatpush2.bf16.msra.mxu0 0
    %175 = vmatprep.subr.bf16.mxu0 0
    %176 = vmatpush2.bf16.msra.mxu0 0
    %177 = vmatprep.subr.bf16.mxu0 0
    %178 = vmatpush2.bf16.msra.mxu0 0
    %179 = vmatprep.subr.bf16.mxu0 0
    %180 = vmatpush2.bf16.msra.mxu0 0
    %181 = vmatprep.subr.bf16.mxu0 0
    %182 = vmatpush2.bf16.msra.mxu0 0
    %183 = vmatprep.subr.bf16.mxu0 0
    %184 = vmatpush2.bf16.msra.mxu0 0
    %185 = vmatprep.mubr.bf16.mxu0 0
    %186 = vmatmul.mubr.bf16.gmra.mxu0 %v56
    %v187 = vpop.f32.mrf.mxu0
    %v188 = vadd.f32 0.0, %v187
    %v189 = vpop.f32.mrf.mxu0
    %v190 = vadd.f32 0.0, %v189
    %v191 = vpop.f32.mrf.mxu0
    %v192 = vadd.f32 0.0, %v191
    %v193 = vpop.f32.mrf.mxu0
    %v194 = vadd.f32 0.0, %v193
    %195 = vmatprep.mubr.bf16.mxu0 0
    %196 = vmatmul.mubr.bf16.gmra.mxu0 %v59
    %v197 = vpop.f32.mrf.mxu0
    %v198 = vadd.f32 0.0, %v197
    %v199 = vpop.f32.mrf.mxu0
    %v200 = vadd.f32 0.0, %v199
    %v201 = vpop.f32.mrf.mxu0
    %v202 = vadd.f32 0.0, %v201
    %v203 = vpop.f32.mrf.mxu0
    %v204 = vadd.f32 0.0, %v203
    %205 = vmatprep.mubr.bf16.mxu0 0
    %206 = vmatmul.mubr.bf16.gmra.mxu0 %v62
    %v207 = vpop.f32.mrf.mxu0
    %v208 = vadd.f32 0.0, %v207
    %v209 = vpop.f32.mrf.mxu0
    %v210 = vadd.f32 0.0, %v209
    %v211 = vpop.f32.mrf.mxu0
    %v212 = vadd.f32 0.0, %v211
    %v213 = vpop.f32.mrf.mxu0
    %v214 = vadd.f32 0.0, %v213
    %215 = vmatprep.mubr.bf16.mxu0 0
    %216 = vmatmul.mubr.bf16.gmra.mxu0 %v65
    %v217 = vpop.f32.mrf.mxu0
    %v218 = vadd.f32 0.0, %v217
    %v219 = vpop.f32.mrf.mxu0
    %v220 = vadd.f32 0.0, %v219
    %v221 = vpop.f32.mrf.mxu0
    %v222 = vadd.f32 0.0, %v221
    %v223 = vpop.f32.mrf.mxu0
    %v224 = vadd.f32 0.0, %v223
    %225 = vdwg.mxu0
    %v226 = vlaneseq
    %v227 = vand.u32 %v226, 127
    %v228 = vadd.s32 %v227, 128
    %v229 = vadd.s32 %v227, 256
    %v230 = vadd.s32 %v227, 384
    %v231 = vand.u32 %v227, 127
    %v232 = vand.u32 %v228, 127
    %v233 = vand.u32 %v229, 127
    %v234 = vand.u32 %v230, 127
    %v235 = vcvt.s32.f32 %v231
    %v236 = vcvt.s32.f32 %v232
    %v237 = vcvt.s32.f32 %v233
    %v238 = vcvt.s32.f32 %v234
    %vm239 = vcmp.eq.f32.partialorder %v115, %v235
    %vm240 = vcmp.eq.f32.partialorder %v117, %v236
    %vm241 = vcmp.eq.f32.partialorder %v188, %v237
    %vm242 = vcmp.eq.f32.partialorder %v190, %v238
    %vm243 = vcmp.eq.f32.partialorder %v119, %v235
    %vm244 = vcmp.eq.f32.partialorder %v121, %v236
    %vm245 = vcmp.eq.f32.partialorder %v192, %v237
    %vm246 = vcmp.eq.f32.partialorder %v194, %v238
    %vm247 = vcmp.eq.f32.partialorder %v125, %v235
    %vm248 = vcmp.eq.f32.partialorder %v127, %v236
    %vm249 = vcmp.eq.f32.partialorder %v198, %v237
    %vm250 = vcmp.eq.f32.partialorder %v200, %v238
    %vm251 = vcmp.eq.f32.partialorder %v129, %v235
    %vm252 = vcmp.eq.f32.partialorder %v131, %v236
    %vm253 = vcmp.eq.f32.partialorder %v202, %v237
    %vm254 = vcmp.eq.f32.partialorder %v204, %v238
    %vm255 = vcmp.eq.f32.partialorder %v135, %v235
    %vm256 = vcmp.eq.f32.partialorder %v137, %v236
    %vm257 = vcmp.eq.f32.partialorder %v208, %v237
    %vm258 = vcmp.eq.f32.partialorder %v210, %v238
    %vm259 = vcmp.eq.f32.partialorder %v139, %v235
    %vm260 = vcmp.eq.f32.partialorder %v141, %v236
    %vm261 = vcmp.eq.f32.partialorder %v212, %v237
    %vm262 = vcmp.eq.f32.partialorder %v214, %v238
    %vm263 = vcmp.eq.f32.partialorder %v145, %v235
    %vm264 = vcmp.eq.f32.partialorder %v147, %v236
    %vm265 = vcmp.eq.f32.partialorder %v218, %v237
    %vm266 = vcmp.eq.f32.partialorder %v220, %v238
    %vm267 = vcmp.eq.f32.partialorder %v149, %v235
    %vm268 = vcmp.eq.f32.partialorder %v151, %v236
    %vm269 = vcmp.eq.f32.partialorder %v222, %v237
    %vm270 = vcmp.eq.f32.partialorder %v224, %v238
    %v271 = vsel %vm239, 1, 0
    %v272 = vsel %vm240, 1, 0
    %v273 = vsel %vm241, 1, 0
    %v274 = vsel %vm242, 1, 0
    %v275 = vsel %vm243, 1, 0
    %v276 = vsel %vm244, 1, 0
    %v277 = vsel %vm245, 1, 0
    %v278 = vsel %vm246, 1, 0
    %v279 = vsel %vm247, 1, 0
    %v280 = vsel %vm248, 1, 0
    %v281 = vsel %vm249, 1, 0
    %v282 = vsel %vm250, 1, 0
    %v283 = vsel %vm251, 1, 0
    %v284 = vsel %vm252, 1, 0
    %v285 = vsel %vm253, 1, 0
    %v286 = vsel %vm254, 1, 0
    %v287 = vsel %vm255, 1, 0
    %v288 = vsel %vm256, 1, 0
    %v289 = vsel %vm257, 1, 0
    %v290 = vsel %vm258, 1, 0
    %v291 = vsel %vm259, 1, 0
    %v292 = vsel %vm260, 1, 0
    %v293 = vsel %vm261, 1, 0
    %v294 = vsel %vm262, 1, 0
    %v295 = vsel %vm263, 1, 0
    %v296 = vsel %vm264, 1, 0
    %v297 = vsel %vm265, 1, 0
    %v298 = vsel %vm266, 1, 0
    %v299 = vsel %vm267, 1, 0
    %v300 = vsel %vm268, 1, 0
    %v301 = vsel %vm269, 1, 0
    %v302 = vsel %vm270, 1, 0
    %v303 = vcvt.s32.f32 %v271
    %v304 = vcvt.s32.f32 %v272
    %v305 = vcvt.s32.f32 %v273
    %v306 = vcvt.s32.f32 %v274
    %v307 = vcvt.s32.f32 %v275
    %v308 = vcvt.s32.f32 %v276
    %v309 = vcvt.s32.f32 %v277
    %v310 = vcvt.s32.f32 %v278
    %v311 = vcvt.s32.f32 %v279
    %v312 = vcvt.s32.f32 %v280
    %v313 = vcvt.s32.f32 %v281
    %v314 = vcvt.s32.f32 %v282
    %v315 = vcvt.s32.f32 %v283
    %v316 = vcvt.s32.f32 %v284
    %v317 = vcvt.s32.f32 %v285
    %v318 = vcvt.s32.f32 %v286
    %v319 = vcvt.s32.f32 %v287
    %v320 = vcvt.s32.f32 %v288
    %v321 = vcvt.s32.f32 %v289
    %v322 = vcvt.s32.f32 %v290
    %v323 = vcvt.s32.f32 %v291
    %v324 = vcvt.s32.f32 %v292
    %v325 = vcvt.s32.f32 %v293
    %v326 = vcvt.s32.f32 %v294
    %v327 = vcvt.s32.f32 %v295
    %v328 = vcvt.s32.f32 %v296
    %v329 = vcvt.s32.f32 %v297
    %v330 = vcvt.s32.f32 %v298
    %v331 = vcvt.s32.f32 %v299
    %v332 = vcvt.s32.f32 %v300
    %v333 = vcvt.s32.f32 %v301
    %v334 = vcvt.s32.f32 %v302
    %v335 = vld [vmem:[#allocation2] sm:$0xff]
    %v336 = vld [vmem:[#allocation2 + $0x8] sm:$0xff]
    %v337 = vld [vmem:[#allocation2 + $0x10] sm:$0xff]
    %v338 = vld [vmem:[#allocation2 + $0x18] sm:$0xff]
    %v339 = vld [vmem:[#allocation2 + $0x20] sm:$0xff]
    %v340 = vld [vmem:[#allocation2 + $0x28] sm:$0xff]
    %v341 = vld [vmem:[#allocation2 + $0x30] sm:$0xff]
    %v342 = vld [vmem:[#allocation2 + $0x38] sm:$0xff]
    %v343 = vld [vmem:[#allocation2 + $0x40] sm:$0xff]
    %v344 = vld [vmem:[#allocation2 + $0x48] sm:$0xff]
    %v345 = vld [vmem:[#allocation2 + $0x50] sm:$0xff]
    %v346 = vld [vmem:[#allocation2 + $0x58] sm:$0xff]
    %v347 = vld [vmem:[#allocation2 + $0x60] sm:$0xff]
    %v348 = vld [vmem:[#allocation2 + $0x68] sm:$0xff]
    %v349 = vld [vmem:[#allocation2 + $0x70] sm:$0xff]
    %v350 = vld [vmem:[#allocation2 + $0x78] sm:$0xff]
    %v351 = vld [vmem:[#allocation2 + $0x80] sm:$0xff]
    %v352 = vld [vmem:[#allocation2 + $0x88] sm:$0xff]
    %v353 = vld [vmem:[#allocation2 + $0x90] sm:$0xff]
    %v354 = vld [vmem:[#allocation2 + $0x98] sm:$0xff]
    %v355 = vld [vmem:[#allocation2 + $0xa0] sm:$0xff]
    %v356 = vld [vmem:[#allocation2 + $0xa8] sm:$0xff]
    %v357 = vld [vmem:[#allocation2 + $0xb0] sm:$0xff]
    %v358 = vld [vmem:[#allocation2 + $0xb8] sm:$0xff]
    %v359 = vld [vmem:[#allocation2 + $0xc0] sm:$0xff]
    %v360 = vld [vmem:[#allocation2 + $0xc8] sm:$0xff]
    %v361 = vld [vmem:[#allocation2 + $0xd0] sm:$0xff]
    %v362 = vld [vmem:[#allocation2 + $0xd8] sm:$0xff]
    %v363 = vld [vmem:[#allocation2 + $0xe0] sm:$0xff]
    %v364 = vld [vmem:[#allocation2 + $0xe8] sm:$0xff]
    %v365 = vld [vmem:[#allocation2 + $0xf0] sm:$0xff]
    %v366 = vld [vmem:[#allocation2 + $0xf8] sm:$0xff]
    %v367 = vld [vmem:[#allocation2 + $0x100] sm:$0xff]
    %v368 = vld [vmem:[#allocation2 + $0x108] sm:$0xff]
    %v369 = vld [vmem:[#allocation2 + $0x110] sm:$0xff]
    %v370 = vld [vmem:[#allocation2 + $0x118] sm:$0xff]
    %v371 = vld [vmem:[#allocation2 + $0x120] sm:$0xff]
    %v372 = vld [vmem:[#allocation2 + $0x128] sm:$0xff]
    %v373 = vld [vmem:[#allocation2 + $0x130] sm:$0xff]
    %v374 = vld [vmem:[#allocation2 + $0x138] sm:$0xff]
    %v375 = vld [vmem:[#allocation2 + $0x140] sm:$0xff]
    %v376 = vld [vmem:[#allocation2 + $0x148] sm:$0xff]
    %v377 = vld [vmem:[#allocation2 + $0x150] sm:$0xff]
    %v378 = vld [vmem:[#allocation2 + $0x158] sm:$0xff]
    %v379 = vld [vmem:[#allocation2 + $0x160] sm:$0xff]
    %v380 = vld [vmem:[#allocation2 + $0x168] sm:$0xff]
    %v381 = vld [vmem:[#allocation2 + $0x170] sm:$0xff]
    %v382 = vld [vmem:[#allocation2 + $0x178] sm:$0xff]
    %v383 = vld [vmem:[#allocation2 + $0x180] sm:$0xff]
    %v384 = vld [vmem:[#allocation2 + $0x188] sm:$0xff]
    %v385 = vld [vmem:[#allocation2 + $0x190] sm:$0xff]
    %v386 = vld [vmem:[#allocation2 + $0x198] sm:$0xff]
    %v387 = vld [vmem:[#allocation2 + $0x1a0] sm:$0xff]
    %v388 = vld [vmem:[#allocation2 + $0x1a8] sm:$0xff]
    %v389 = vld [vmem:[#allocation2 + $0x1b0] sm:$0xff]
    %v390 = vld [vmem:[#allocation2 + $0x1b8] sm:$0xff]
    %v391 = vld [vmem:[#allocation2 + $0x1c0] sm:$0xff]
    %v392 = vld [vmem:[#allocation2 + $0x1c8] sm:$0xff]
    %v393 = vld [vmem:[#allocation2 + $0x1d0] sm:$0xff]
    %v394 = vld [vmem:[#allocation2 + $0x1d8] sm:$0xff]
    %v395 = vld [vmem:[#allocation2 + $0x1e0] sm:$0xff]
    %v396 = vld [vmem:[#allocation2 + $0x1e8] sm:$0xff]
    %v397 = vld [vmem:[#allocation2 + $0x1f0] sm:$0xff]
    %v398 = vld [vmem:[#allocation2 + $0x1f8] sm:$0xff]
    %399 = vmatprep.subr.mxu0 0.0
    %400 = vmatpush1.msra.mxu0 %v350
    %401 = vmatprep.subr.mxu0 0.0
    %402 = vmatpush1.msra.mxu0 %v349
    %403 = vmatprep.subr.mxu0 0.0
    %404 = vmatpush1.msra.mxu0 %v348
    %405 = vmatprep.subr.mxu0 0.0
    %406 = vmatpush1.msra.mxu0 %v347
    %407 = vmatprep.subr.mxu0 0.0
    %408 = vmatpush1.msra.mxu0 %v346
    %409 = vmatprep.subr.mxu0 0.0
    %410 = vmatpush1.msra.mxu0 %v345
    %411 = vmatprep.subr.mxu0 0.0
    %412 = vmatpush1.msra.mxu0 %v344
    %413 = vmatprep.subr.mxu0 0.0
    %414 = vmatpush1.msra.mxu0 %v343
    %415 = vmatprep.subr.mxu0 0.0
    %416 = vmatpush1.msra.mxu0 %v342
    %417 = vmatprep.subr.mxu0 0.0
    %418 = vmatpush1.msra.mxu0 %v341
    %419 = vmatprep.subr.mxu0 0.0
    %420 = vmatpush1.msra.mxu0 %v340
    %421 = vmatprep.subr.mxu0 0.0
    %422 = vmatpush1.msra.mxu0 %v339
    %423 = vmatprep.subr.mxu0 0.0
    %424 = vmatpush1.msra.mxu0 %v338
    %425 = vmatprep.subr.mxu0 0.0
    %426 = vmatpush1.msra.mxu0 %v337
    %427 = vmatprep.subr.mxu0 0.0
    %428 = vmatpush1.msra.mxu0 %v336
    %429 = vmatprep.subr.mxu0 0.0
    %430 = vmatpush1.msra.mxu0 %v335
    %431 = vmatprep.subr.mxu0 0.0
    %432 = vmatpush2.msra.mxu0 %v366
    %433 = vmatprep.subr.mxu0 0.0
    %434 = vmatpush2.msra.mxu0 %v365
    %435 = vmatprep.subr.mxu0 0.0
    %436 = vmatpush2.msra.mxu0 %v364
    %437 = vmatprep.subr.mxu0 0.0
    %438 = vmatpush2.msra.mxu0 %v363
    %439 = vmatprep.subr.mxu0 0.0
    %440 = vmatpush2.msra.mxu0 %v362
    %441 = vmatprep.subr.mxu0 0.0
    %442 = vmatpush2.msra.mxu0 %v361
    %443 = vmatprep.subr.mxu0 0.0
    %444 = vmatpush2.msra.mxu0 %v360
    %445 = vmatprep.subr.mxu0 0.0
    %446 = vmatpush2.msra.mxu0 %v359
    %447 = vmatprep.subr.mxu0 0.0
    %448 = vmatpush2.msra.mxu0 %v358
    %449 = vmatprep.subr.mxu0 0.0
    %450 = vmatpush2.msra.mxu0 %v357
    %451 = vmatprep.subr.mxu0 0.0
    %452 = vmatpush2.msra.mxu0 %v356
    %453 = vmatprep.subr.mxu0 0.0
    %454 = vmatpush2.msra.mxu0 %v355
    %455 = vmatprep.subr.mxu0 0.0
    %456 = vmatpush2.msra.mxu0 %v354
    %457 = vmatprep.subr.mxu0 0.0
    %458 = vmatpush2.msra.mxu0 %v353
    %459 = vmatprep.subr.mxu0 0.0
    %460 = vmatpush2.msra.mxu0 %v352
    %461 = vmatprep.subr.mxu0 0.0
    %462 = vmatpush2.msra.mxu0 %v351
    %463 = vmatprep.mubr.f32.mxu0 %v304
    %464 = vmatmul.mubr.f32.gmra.mxu0 %v303
    %v465 = vpop.f32.mrf.mxu0
    %v466 = vadd.f32 0.0, %v465
    %v467 = vpop.f32.mrf.mxu0
    %468 = vmatprep.mubr.f32.mxu0 %v308
    %469 = vmatmul.mubr.f32.gmra.mxu0 %v307
    %v470 = vpop.f32.mrf.mxu0
    %v471 = vadd.f32 0.0, %v470
    %v472 = vpop.f32.mrf.mxu0
    %473 = vmatprep.mubr.f32.mxu0 %v312
    %474 = vmatmul.mubr.f32.gmra.mxu0 %v311
    %v475 = vpop.f32.mrf.mxu0
    %v476 = vadd.f32 0.0, %v475
    %v477 = vpop.f32.mrf.mxu0
    %478 = vmatprep.mubr.f32.mxu0 %v316
    %479 = vmatmul.mubr.f32.gmra.mxu0 %v315
    %v480 = vpop.f32.mrf.mxu0
    %v481 = vadd.f32 0.0, %v480
    %v482 = vpop.f32.mrf.mxu0
    %483 = vmatprep.mubr.f32.mxu0 %v320
    %484 = vmatmul.mubr.f32.gmra.mxu0 %v319
    %v485 = vpop.f32.mrf.mxu0
    %v486 = vadd.f32 0.0, %v485
    %v487 = vpop.f32.mrf.mxu0
    %488 = vmatprep.mubr.f32.mxu0 %v324
    %489 = vmatmul.mubr.f32.gmra.mxu0 %v323
    %v490 = vpop.f32.mrf.mxu0
    %v491 = vadd.f32 0.0, %v490
    %v492 = vpop.f32.mrf.mxu0
    %493 = vmatprep.mubr.f32.mxu0 %v328
    %494 = vmatmul.mubr.f32.gmra.mxu0 %v327
    %v495 = vpop.f32.mrf.mxu0
    %v496 = vadd.f32 0.0, %v495
    %v497 = vpop.f32.mrf.mxu0
    %498 = vmatprep.mubr.f32.mxu0 %v332
    %499 = vmatmul.mubr.f32.gmra.mxu0 %v331
    %v500 = vpop.f32.mrf.mxu0
    %v501 = vadd.f32 0.0, %v500
    %v502 = vpop.f32.mrf.mxu0
    %503 = vdwg.mxu0
    %504 = vmatprep.subr.mxu0 0.0
    %505 = vmatpush1.msra.mxu0 %v382
    %506 = vmatprep.subr.mxu0 0.0
    %507 = vmatpush1.msra.mxu0 %v381
    %508 = vmatprep.subr.mxu0 0.0
    %509 = vmatpush1.msra.mxu0 %v380
    %510 = vmatprep.subr.mxu0 0.0
    %511 = vmatpush1.msra.mxu0 %v379
    %512 = vmatprep.subr.mxu0 0.0
    %513 = vmatpush1.msra.mxu0 %v378
    %514 = vmatprep.subr.mxu0 0.0
    %515 = vmatpush1.msra.mxu0 %v377
    %516 = vmatprep.subr.mxu0 0.0
    %517 = vmatpush1.msra.mxu0 %v376
    %518 = vmatprep.subr.mxu0 0.0
    %519 = vmatpush1.msra.mxu0 %v375
    %520 = vmatprep.subr.mxu0 0.0
    %521 = vmatpush1.msra.mxu0 %v374
    %522 = vmatprep.subr.mxu0 0.0
    %523 = vmatpush1.msra.mxu0 %v373
    %524 = vmatprep.subr.mxu0 0.0
    %525 = vmatpush1.msra.mxu0 %v372
    %526 = vmatprep.subr.mxu0 0.0
    %527 = vmatpush1.msra.mxu0 %v371
    %528 = vmatprep.subr.mxu0 0.0
    %529 = vmatpush1.msra.mxu0 %v370
    %530 = vmatprep.subr.mxu0 0.0
    %531 = vmatpush1.msra.mxu0 %v369
    %532 = vmatprep.subr.mxu0 0.0
    %533 = vmatpush1.msra.mxu0 %v368
    %534 = vmatprep.subr.mxu0 0.0
    %535 = vmatpush1.msra.mxu0 %v367
    %536 = vmatprep.subr.mxu0 0.0
    %537 = vmatpush2.msra.mxu0 %v398
    %538 = vmatprep.subr.mxu0 0.0
    %539 = vmatpush2.msra.mxu0 %v397
    %540 = vmatprep.subr.mxu0 0.0
    %541 = vmatpush2.msra.mxu0 %v396
    %542 = vmatprep.subr.mxu0 0.0
    %543 = vmatpush2.msra.mxu0 %v395
    %544 = vmatprep.subr.mxu0 0.0
    %545 = vmatpush2.msra.mxu0 %v394
    %546 = vmatprep.subr.mxu0 0.0
    %547 = vmatpush2.msra.mxu0 %v393
    %548 = vmatprep.subr.mxu0 0.0
    %549 = vmatpush2.msra.mxu0 %v392
    %550 = vmatprep.subr.mxu0 0.0
    %551 = vmatpush2.msra.mxu0 %v391
    %552 = vmatprep.subr.mxu0 0.0
    %553 = vmatpush2.msra.mxu0 %v390
    %554 = vmatprep.subr.mxu0 0.0
    %555 = vmatpush2.msra.mxu0 %v389
    %556 = vmatprep.subr.mxu0 0.0
    %557 = vmatpush2.msra.mxu0 %v388
    %558 = vmatprep.subr.mxu0 0.0
    %559 = vmatpush2.msra.mxu0 %v387
    %560 = vmatprep.subr.mxu0 0.0
    %561 = vmatpush2.msra.mxu0 %v386
    %562 = vmatprep.subr.mxu0 0.0
    %563 = vmatpush2.msra.mxu0 %v385
    %564 = vmatprep.subr.mxu0 0.0
    %565 = vmatpush2.msra.mxu0 %v384
    %566 = vmatprep.subr.mxu0 0.0
    %567 = vmatpush2.msra.mxu0 %v383
    %568 = vmatprep.mubr.f32.mxu0 %v306
    %569 = vmatmul.mubr.f32.gmra.mxu0 %v305
    %v570 = vpop.f32.mrf.mxu0
    %v571 = vadd.f32 %v466, %v570
    %v572 = vpop.f32.mrf.mxu0
    %573 = vmatprep.mubr.f32.mxu0 %v310
    %574 = vmatmul.mubr.f32.gmra.mxu0 %v309
    %v575 = vpop.f32.mrf.mxu0
    %v576 = vadd.f32 %v471, %v575
    %v577 = vpop.f32.mrf.mxu0
    %578 = vmatprep.mubr.f32.mxu0 %v314
    %579 = vmatmul.mubr.f32.gmra.mxu0 %v313
    %v580 = vpop.f32.mrf.mxu0
    %v581 = vadd.f32 %v476, %v580
    %v582 = vpop.f32.mrf.mxu0
    %583 = vmatprep.mubr.f32.mxu0 %v318
    %584 = vmatmul.mubr.f32.gmra.mxu0 %v317
    %v585 = vpop.f32.mrf.mxu0
    %v586 = vadd.f32 %v481, %v585
    %v587 = vpop.f32.mrf.mxu0
    %588 = vmatprep.mubr.f32.mxu0 %v322
    %589 = vmatmul.mubr.f32.gmra.mxu0 %v321
    %v590 = vpop.f32.mrf.mxu0
    %v591 = vadd.f32 %v486, %v590
    %v592 = vpop.f32.mrf.mxu0
    %593 = vmatprep.mubr.f32.mxu0 %v326
    %594 = vmatmul.mubr.f32.gmra.mxu0 %v325
    %v595 = vpop.f32.mrf.mxu0
    %v596 = vadd.f32 %v491, %v595
    %v597 = vpop.f32.mrf.mxu0
    %598 = vmatprep.mubr.f32.mxu0 %v330
    %599 = vmatmul.mubr.f32.gmra.mxu0 %v329
    %v600 = vpop.f32.mrf.mxu0
    %v601 = vadd.f32 %v496, %v600
    %v602 = vpop.f32.mrf.mxu0
    %603 = vmatprep.mubr.f32.mxu0 %v334
    %604 = vmatmul.mubr.f32.gmra.mxu0 %v333
    %v605 = vpop.f32.mrf.mxu0
    %v606 = vadd.f32 %v501, %v605
    %v607 = vpop.f32.mrf.mxu0
    %608 = vdwg.mxu0
    %609 = vst [vmem:[#allocation5] sm:$0xff] %v571
    %610 = vst [vmem:[#allocation5 + $0x8] sm:$0xff] %v576
    %611 = vst [vmem:[#allocation5 + $0x10] sm:$0xff] %v581
    %612 = vst [vmem:[#allocation5 + $0x18] sm:$0xff] %v586
    %613 = vst [vmem:[#allocation5 + $0x20] sm:$0xff] %v591
    %614 = vst [vmem:[#allocation5 + $0x28] sm:$0xff] %v596
    %615 = vst [vmem:[#allocation5 + $0x30] sm:$0xff] %v601
    %616 = vst [vmem:[#allocation5 + $0x38] sm:$0x1f] %v606
    // Predicated region
    $region18: #{tpu_custom_call.1} parent=1 // pred_check
      _
    $region19: #{tpu_custom_call.1} parent=1 // pred_check_branch
      %618 = sbr.rel (0) target = $region21
    $region20: #{tpu_custom_call.1} parent=1 // pred_region
      %s620 = ssub.s32 1024, 1024
      %621 = vsyncadd [#allocation4], %s620
      %s622 = sshll.u32 [#allocation5], 4
      %s623 = int_to_ptr.vmem [resolvable:$true] %s622
      %628 = dma.vmem_to_hbm [thread:$0]  %s623, 1024, %s3, [#allocation4], 128, 128, 8
    $region21: #{tpu_custom_call.1} parent=1 // pred_fallthru
      _
    // Predicated region
    $region22: #{tpu_custom_call.1} parent=1 // pred_check
      _
    $region23: #{tpu_custom_call.1} parent=1 // pred_check_branch
      %630 = sbr.rel (0) target = $region25
    $region24: #{tpu_custom_call.1} parent=1 // pred_region
      %631 = dma.done [#allocation4], 1024
    $region25: #{tpu_custom_call.1} parent=1 // pred_fallthru
      _
    %632 = vsyncpa [#allocation3], 1
    %633 = vsyncpa [#allocation4], 1

</llo_original>
